<compile_context>
chip_gen: v5e
topology: v5e:2x2
jax: 0.10.0
libtpu: 0.0.40
codegen_flags: <defaults>
</compile_context>

<pallas_src>
import functools

import jax
import jax.numpy as jnp
from jax.experimental import pallas as pl
from jax.experimental.pallas import tpu as pltpu

_LANE = 128
# ~1M elements per input buffer per grid step (4 MiB f32, 2 MiB bf16).
_TARGET_TILE_ELEMS = 1 << 20
_VMEM_LIMIT_BYTES = 48 * 1024 * 1024  # safe on v5e/v6e (128 MiB) and v7x (64 MiB)


def _round_up(a, b):
    return (a + b - 1) // b * b


def _row_align(dtype):
    # Sub-32-bit dtypes pack 2/4 rows per sublane: align row tiles to the
    # packed-sublane multiple (8 for f32, 16 for bf16/f16, 32 for int8/fp8).
    return 8 * max(1, 4 // jnp.dtype(dtype).itemsize)


def _choose_c_width(n_main):
    # n_main is a positive multiple of 128; pick the widest lane-dense width
    # that divides it so the wrapper never pads or slices the main body.
    for c in (1024, 512, 256, 128):
        if n_main % c == 0:
            return c
    raise AssertionError("n_main must be a multiple of 128")


def _tiling(rows, c_width, dtype):
    align = _row_align(dtype)
    max_rows = max(align, _TARGET_TILE_ELEMS // c_width)
    tile_r = min(max_rows, _round_up(rows, align))
    num_tiles = pl.cdiv(rows, tile_r)
    return tile_r, num_tiles


def _compiler_params():
    return pltpu.CompilerParams(
        dimension_semantics=("parallel",),   # no cross-tile dependency
        vmem_limit_bytes=_VMEM_LIMIT_BYTES,
    )


def _mse_partial_sum_kernel(x_ref, y_ref, psum_ref, *, rows, tile_r, mask_tail):
    """Per-tile lane/sublane-dense partial sums of (x - y)^2.

    x_ref, y_ref : (tile_r, C) in native dtype
    psum_ref     : (1, 8, C) f32 -- rows folded in groups of 8 (pure VPU adds,
                   no cross-lane XLU reduce). Final sum happens in the wrapper.
    """
    d = x_ref[...].astype(jnp.float32) - y_ref[...].astype(jnp.float32)
    d2 = d * d
    if mask_tail:
        # Ragged last block: out-of-bounds rows hold unspecified data -> zero
        # them before accumulating.
        row_id = (jax.lax.broadcasted_iota(jnp.int32, d2.shape, 0)
                  + pl.program_id(0) * tile_r)
        d2 = jnp.where(row_id < rows, d2, 0.0)
    tr, c = d2.shape
    # (tile_r, C) -> (tile_r // 8, 8, C) is layout-free; summing axis 0 is
    # just vreg-wise adds on the VPU.
    psum_ref[...] = jnp.sum(d2.reshape(tr // 8, 8, c), axis=0)[None]


def _mse_elem_kernel(x_ref, y_ref, out_ref):
    """Elementwise squared difference (reduce=False path)."""
    d = x_ref[...].astype(jnp.float32) - y_ref[...].astype(jnp.float32)
    out_ref[...] = (d * d).astype(out_ref.dtype)


def _partial_sum_2d(x2, y2):
    rows, c_width = x2.shape
    tile_r, num_tiles = _tiling(rows, c_width, x2.dtype)
    itemsize = jnp.dtype(x2.dtype).itemsize
    kernel = functools.partial(
        _mse_partial_sum_kernel,
        rows=rows, tile_r=tile_r, mask_tail=(rows % tile_r) != 0)
    psums = pl.pallas_call(
        kernel,
        out_shape=jax.ShapeDtypeStruct((num_tiles, 8, c_width), jnp.float32),
        grid_spec=pltpu.PrefetchScalarGridSpec(
            num_scalar_prefetch=0,
            grid=(num_tiles,),
            in_specs=[
                pl.BlockSpec((tile_r, c_width), lambda i: (i, 0)),
                pl.BlockSpec((tile_r, c_width), lambda i: (i, 0)),
            ],
            out_specs=pl.BlockSpec((1, 8, c_width), lambda i: (i, 0, 0)),
        ),
        compiler_params=_compiler_params(),
        cost_estimate=pl.CostEstimate(
            flops=3 * rows * c_width,
            transcendentals=0,
            bytes_accessed=2 * rows * c_width * itemsize
            + num_tiles * 8 * c_width * 4,
        ),
    )(x2, y2)
    return jnp.sum(psums)  # tiny, contiguous, lane-dense


def _squared_diff_2d(x2, y2, out_dtype):
    rows, c_width = x2.shape
    tile_r, num_tiles = _tiling(rows, c_width, x2.dtype)
    itemsize = jnp.dtype(x2.dtype).itemsize
    out_itemsize = jnp.dtype(out_dtype).itemsize
    return pl.pallas_call(
        _mse_elem_kernel,
        out_shape=jax.ShapeDtypeStruct((rows, c_width), out_dtype),
        grid_spec=pltpu.PrefetchScalarGridSpec(
            num_scalar_prefetch=0,
            grid=(num_tiles,),
            in_specs=[
                pl.BlockSpec((tile_r, c_width), lambda i: (i, 0)),
                pl.BlockSpec((tile_r, c_width), lambda i: (i, 0)),
            ],
            out_specs=pl.BlockSpec((tile_r, c_width), lambda i: (i, 0)),
        ),
        compiler_params=_compiler_params(),
        cost_estimate=pl.CostEstimate(
            flops=2 * rows * c_width,
            transcendentals=0,
            bytes_accessed=rows * c_width * (2 * itemsize + out_itemsize),
        ),
    )(x2, y2)


def mse_loss(x, y, size_average=True, reduce=True):
    """JAX/Pallas equivalent of torch.nn.MSELoss(size_average, reduce)(x, y)."""
    assert x.shape == y.shape, "input and target must have the same shape"
    orig_shape = x.shape
    common = jnp.result_type(x.dtype, y.dtype)
    if x.dtype != common:
        x = x.astype(common)
    if y.dtype != common:
        y = y.astype(common)
    n = x.size

    xf = x.reshape(-1)   # metadata-only flatten (no copy)
    yf = y.reshape(-1)
    rem = n % _LANE      # <128-element tail handled in plain JAX
    n_main = n - rem

    if reduce:
        total = jnp.zeros((), jnp.float32)
        if n_main > 0:
            c_width = _choose_c_width(n_main)
            rows = n_main // c_width
            xm = xf if rem == 0 else xf[:n_main]
            ym = yf if rem == 0 else yf[:n_main]
            total = total + _partial_sum_2d(
                xm.reshape(rows, c_width), ym.reshape(rows, c_width))
        if rem > 0:
            dt = xf[n_main:].astype(jnp.float32) - yf[n_main:].astype(jnp.float32)
            total = total + jnp.sum(dt * dt)
        if size_average:
            total = total / n   # n == 0 -> nan, matching torch's mean of empty
        return total.astype(common)

    # reduce=False: elementwise (x - y)^2 with the original shape.
    if n == 0:
        return jnp.zeros(orig_shape, dtype=common)
    parts = []
    if n_main > 0:
        c_width = _choose_c_width(n_main)
        rows = n_main // c_width
        xm = xf if rem == 0 else xf[:n_main]
        ym = yf if rem == 0 else yf[:n_main]
        parts.append(
            _squared_diff_2d(xm.reshape(rows, c_width),
                             ym.reshape(rows, c_width), common).reshape(-1))
    if rem > 0:
        dt = xf[n_main:].astype(jnp.float32) - yf[n_main:].astype(jnp.float32)
        parts.append((dt * dt).astype(common))
    out = parts[0] if len(parts) == 1 else jnp.concatenate(parts)
    return out.reshape(orig_shape)


if __name__ == "__main__":
    key = jax.random.PRNGKey(0)
    k1, k2, k3, k4, k5, k6 = jax.random.split(key, 6)

    # Primary shapes: (N, C, H, W) = (2, 4, 16, 16) -> n = 2048 (lane-aligned:
    # zero wrapper-side copies, free reshapes only).
    x = jax.random.normal(k1, (2, 4, 16, 16), dtype=jnp.float32)
    y = jax.random.normal(k2, (2, 4, 16, 16), dtype=jnp.float32)

    out_mean = jax.block_until_ready(mse_loss(x, y))                      # mean
    out_sum = jax.block_until_ready(mse_loss(x, y, size_average=False))   # sum
    out_elem = jax.block_until_ready(mse_loss(x, y, reduce=False))        # per-elem

    ref_elem = (x - y) ** 2
    ref_sum = jnp.sum(ref_elem)
    ref_mean = ref_sum / x.size

    assert jnp.allclose(out_mean, ref_mean, atol=1e-6, rtol=1e-4), (out_mean, ref_mean)
    assert jnp.allclose(out_sum, ref_sum, atol=1e-3, rtol=1e-4), (out_sum, ref_sum)
    assert out_elem.shape == x.shape
    assert jnp.allclose(out_elem, ref_elem, atol=1e-6, rtol=1e-5)

    # Docstring example shape (3, 5): n = 15 < 128 -> pure-JAX tail path.
    a = jax.random.normal(k3, (3, 5), dtype=jnp.float32)
    b = jax.random.normal(k4, (3, 5), dtype=jnp.float32)
    out_small = jax.block_until_ready(mse_loss(a, b))
    ref_small = jnp.mean((a - b) ** 2)
    assert jnp.allclose(out_small, ref_small, atol=1e-6, rtol=1e-4)

    # Ragged shape (5, 130): 640-element kernel body (ragged last row block,
    # masked in-kernel for the sum path) + 10-element JAX tail.
    c = jax.random.normal(k5, (5, 130), dtype=jnp.float32)
    d = jax.random.normal(k6, (5, 130), dtype=jnp.float32)
    out_rag_mean = jax.block_until_ready(mse_loss(c, d))
    out_rag_elem = jax.block_until_ready(mse_loss(c, d, reduce=False))
    ref_rag_elem = (c - d) ** 2
    assert jnp.allclose(out_rag_mean, jnp.mean(ref_rag_elem), atol=1e-6, rtol=1e-4)
    assert out_rag_elem.shape == c.shape
    assert jnp.allclose(out_rag_elem, ref_rag_elem, atol=1e-6, rtol=1e-5)

    # bf16 inputs: DMA'd in native dtype, accumulated in f32 inside the kernel.
    xb = x.astype(jnp.bfloat16)
    yb = y.astype(jnp.bfloat16)
    out_bf = jax.block_until_ready(mse_loss(xb, yb))
    ref_bf = jnp.mean((xb.astype(jnp.float32) - yb.astype(jnp.float32)) ** 2)
    assert jnp.allclose(out_bf.astype(jnp.float32), ref_bf, rtol=2e-2)

    print("KERNEL_OK")
</pallas_src>

<mosaic_0001>
module attributes {stable_mosaic.version = 11 : i64} {
  func.func @_mse_partial_sum_kernel(%arg0: i32, %arg1: memref<8x1024xf32, #tpu.memory_space<vmem>>, %arg2: memref<8x1024xf32, #tpu.memory_space<vmem>>, %arg3: memref<1x8x1024xf32, #tpu.memory_space<vmem>>) attributes {dimension_semantics = [#tpu.dimension_semantics<parallel>], iteration_bounds = array<i64: 1>, scalar_prefetch = 0 : i64, scratch_operands = 0 : i64, tpu.core_type = #tpu.core_type<tc>, window_params = [{transform_indices = @transform_0, window_bounds = array<i64: 8, 1024>}, {transform_indices = @transform_1, window_bounds = array<i64: 8, 1024>}, {transform_indices = @transform_2, window_bounds = array<i64: 1, 8, 1024>}]} {
    %c0 = arith.constant 0 : index
    %c0_0 = arith.constant 0 : index
    %0 = vector.load %arg1[%c0, %c0_0] : memref<8x1024xf32, #tpu.memory_space<vmem>>, vector<8x1024xf32>
    %c0_1 = arith.constant 0 : index
    %c0_2 = arith.constant 0 : index
    %1 = vector.load %arg2[%c0_1, %c0_2] : memref<8x1024xf32, #tpu.memory_space<vmem>>, vector<8x1024xf32>
    %2 = arith.subf %0, %1 : vector<8x1024xf32>
    %3 = arith.mulf %2, %2 : vector<8x1024xf32>
    %4 = tpu.iota {dimensions = array<i32: 0>} : vector<8x1024xi32>
    %c8_i32 = arith.constant 8 : i32
    %5 = arith.muli %arg0, %c8_i32 : i32
    %6 = vector.broadcast %5 : i32 to vector<8x1024xi32>
    %7 = arith.addi %4, %6 : vector<8x1024xi32>
    %c2_i32 = arith.constant 2 : i32
    %8 = vector.broadcast %c2_i32 : i32 to vector<8x1024xi32>
    %9 = arith.cmpi slt, %7, %8 : vector<8x1024xi32>
    %cst = arith.constant 0.000000e+00 : f32
    %10 = vector.broadcast %cst : f32 to vector<8x1024xf32>
    %11 = arith.select %9, %3, %10 : vector<8x1024xi1>, vector<8x1024xf32>
    %12 = vector.shape_cast %11 : vector<8x1024xf32> to vector<1x8x1024xf32>
    %cst_3 = arith.constant dense<0.000000e+00> : vector<8x1024xf32>
    %13 = vector.multi_reduction <add>, %12, %cst_3 [0] : vector<1x8x1024xf32> to vector<8x1024xf32>
    %14 = vector.shape_cast %13 : vector<8x1024xf32> to vector<1x8x1024xf32>
    %c0_4 = arith.constant 0 : index
    %c0_5 = arith.constant 0 : index
    %c0_6 = arith.constant 0 : index
    %15 = vector.load %arg3[%c0_4, %c0_5, %c0_6] : memref<1x8x1024xf32, #tpu.memory_space<vmem>>, vector<1x8x1024xf32>
    tpu.vector_store %arg3[%c0_4, %c0_5, %c0_6], %14 {strides = array<i32>} : memref<1x8x1024xf32, #tpu.memory_space<vmem>>, vector<1x8x1024xf32>,
    return
  }
  func.func @transform_0(%arg0: i32) -> (i32, i32) {
    %c0_i32 = arith.constant 0 : i32
    %c0_i32_0 = arith.constant 0 : i32
    return %arg0, %c0_i32 : i32, i32
  }
  func.func @transform_1(%arg0: i32) -> (i32, i32) {
    %c0_i32 = arith.constant 0 : i32
    %c0_i32_0 = arith.constant 0 : i32
    return %arg0, %c0_i32 : i32, i32
  }
  func.func @transform_2(%arg0: i32) -> (i32, i32, i32) {
    %c0_i32 = arith.constant 0 : i32
    %c0_i32_0 = arith.constant 0 : i32
    %c0_i32_1 = arith.constant 0 : i32
    return %arg0, %c0_i32, %c0_i32_0 : i32, i32, i32
  }
}

</mosaic_0001>

<llo_original>
// kernel: tpu_custom_call.1
$region0: #{tpu_custom_call.1}
  #allocation0 [shape = 'u32[]', space=smem, size = 0x4, offset = 0x4, fixed_abs, tag = 'smem constant byte address 0x4 - core index']
  #allocation1 [shape = 'u32[72,128]{1,0:T(1,128)}', space=vmem, size = 0x9000, scoped, tag = 'internal scratch']
  %s0 = inlined_call_operand.hbm [shape: f32[2,1024], index: 0, kind: input, shape index: {}]
  %s1 = inlined_call_operand.hbm [shape: f32[2,1024], index: 1, kind: input, shape index: {}]
  %s2 = inlined_call_operand.hbm [shape: f32[1,8,1024], index: 2, kind: output, shape index: {}]
  %s3 = sld [smem:[#allocation0]]
  $region26: #{tpu_custom_call.1} parent=0
    _
  %s5 = ssub.s32 1, %s3
  %s6 = scalar_select 0, %s5, %s3
  $region1: #{tpu_custom_call.1} parent=0
    #allocation2 [shape = 'u8[32768]{0}', space=vmem, size = 0x8000, scoped, tag = 'input window, operand 0, single buffered']
    #allocation3 [shape = 's32[1]{0}', space=sflag, size = 0x4, scoped, tag = 'scoped memory for tpu_custom_call.1']
    #allocation4 [shape = 's32[1]{0}', space=sflag, size = 0x4, scoped, tag = 'scoped memory for tpu_custom_call.1']
    #allocation5 [shape = 'u8[32768]{0}', space=vmem, size = 0x8000, scoped, tag = 'input window, operand 1, single buffered']
    #allocation6 [shape = 's32[1]{0}', space=sflag, size = 0x4, scoped, tag = 'scoped memory for tpu_custom_call.1']
    #allocation7 [shape = 'u8[32768]{0}', space=vmem, size = 0x8000, scoped, tag = 'output window, operand 0, single buffered']
    %7 = vsyncpa [#allocation3], 0
    %8 = vsyncpa [#allocation6], 0
    %9 = vsyncpa [#allocation4], 0
    // Predicated region
    $region2: #{tpu_custom_call.1} parent=1 // pred_check
      _
    $region3: #{tpu_custom_call.1} parent=1 // pred_check_branch
      %11 = sbr.rel (0) target = $region5
    $region4: #{tpu_custom_call.1} parent=1 // pred_region
      %13 = vsyncadd [#allocation3], 768
      %s14 = sshll.u32 %s0, 4
      %s15 = int_to_ptr.hbm [resolvable:$true] %s14
      %s16 = sshll.u32 [#allocation2], 4
      %s17 = int_to_ptr.vmem [resolvable:$true] %s16
      %22 = dma.hbm_to_vmem [thread:$0]  %s15, 256, %s17, [#allocation3], 256, 256, 16
    $region5: #{tpu_custom_call.1} parent=1 // pred_fallthru
      _
    // Predicated region
    $region6: #{tpu_custom_call.1} parent=1 // pred_check
      _
    $region7: #{tpu_custom_call.1} parent=1 // pred_check_branch
      %24 = sbr.rel (0) target = $region9
    $region8: #{tpu_custom_call.1} parent=1 // pred_region
      %26 = vsyncadd [#allocation6], 768
      %s27 = sshll.u32 %s1, 4
      %s28 = int_to_ptr.hbm [resolvable:$true] %s27
      %s29 = sshll.u32 [#allocation5], 4
      %s30 = int_to_ptr.vmem [resolvable:$true] %s29
      %35 = dma.hbm_to_vmem [thread:$0]  %s28, 256, %s30, [#allocation6], 256, 256, 16
    $region9: #{tpu_custom_call.1} parent=1 // pred_fallthru
      _
    // Predicated region
    $region10: #{tpu_custom_call.1} parent=1 // pred_check
      _
    $region11: #{tpu_custom_call.1} parent=1 // pred_check_branch
      %37 = sbr.rel (0) target = $region13
    $region12: #{tpu_custom_call.1} parent=1 // pred_region
      %39 = dma.done [#allocation3], 1024
    $region13: #{tpu_custom_call.1} parent=1 // pred_fallthru
      _
    // Predicated region
    $region14: #{tpu_custom_call.1} parent=1 // pred_check
      _
    $region15: #{tpu_custom_call.1} parent=1 // pred_check_branch
      %41 = sbr.rel (0) target = $region17
    $region16: #{tpu_custom_call.1} parent=1 // pred_region
      %43 = dma.done [#allocation6], 1024
    $region17: #{tpu_custom_call.1} parent=1 // pred_fallthru
      _
    %v44 = vld [vmem:[#allocation2] sm:$0xff]
    %v45 = vld [vmem:[#allocation2 + $0x8] sm:$0xff]
    %v46 = vld [vmem:[#allocation2 + $0x10] sm:$0xff]
    %v47 = vld [vmem:[#allocation2 + $0x18] sm:$0xff]
    %v48 = vld [vmem:[#allocation2 + $0x20] sm:$0xff]
    %v49 = vld [vmem:[#allocation2 + $0x28] sm:$0xff]
    %v50 = vld [vmem:[#allocation2 + $0x30] sm:$0xff]
    %v51 = vld [vmem:[#allocation2 + $0x38] sm:$0xff]
    %v52 = vld [vmem:[#allocation5] sm:$0xff]
    %v53 = vld [vmem:[#allocation5 + $0x8] sm:$0xff]
    %v54 = vld [vmem:[#allocation5 + $0x10] sm:$0xff]
    %v55 = vld [vmem:[#allocation5 + $0x18] sm:$0xff]
    %v56 = vld [vmem:[#allocation5 + $0x20] sm:$0xff]
    %v57 = vld [vmem:[#allocation5 + $0x28] sm:$0xff]
    %v58 = vld [vmem:[#allocation5 + $0x30] sm:$0xff]
    %v59 = vld [vmem:[#allocation5 + $0x38] sm:$0xff]
    %v60 = vsub.f32 %v44, %v52
    %v61 = vsub.f32 %v45, %v53
    %v62 = vsub.f32 %v46, %v54
    %v63 = vsub.f32 %v47, %v55
    %v64 = vsub.f32 %v48, %v56
    %v65 = vsub.f32 %v49, %v57
    %v66 = vsub.f32 %v50, %v58
    %v67 = vsub.f32 %v51, %v59
    %v68 = vmul.f32 %v60, %v60
    %v69 = vmul.f32 %v61, %v61
    %v70 = vmul.f32 %v62, %v62
    %v71 = vmul.f32 %v63, %v63
    %v72 = vmul.f32 %v64, %v64
    %v73 = vmul.f32 %v65, %v65
    %v74 = vmul.f32 %v66, %v66
    %v75 = vmul.f32 %v67, %v67
    %v76 = vlaneseq
    %v77 = vshrl.u32 %v76, 7
    %s78 = smul.u32 0, 8
    %v79 = vstv %s78
    %v80 = vadd.s32 %v77, %v79
    %vm81 = vcmp.lt.s32.totalorder %v80, 2
    %90 = vst [vmem:[#allocation1] ss:$4 sm:$0xff] %v68
    %s91 = scalar_lea.vmem [#allocation1], 1
    %92 = vst [vmem:[%s91] ss:$4 sm:$0xff] %v70
    %s93 = scalar_lea.vmem [#allocation1], 2
    %94 = vst [vmem:[%s93] ss:$4 sm:$0xff] %v72
    %s95 = scalar_lea.vmem [#allocation1], 3
    %96 = vst [vmem:[%s95] ss:$4 sm:$0xff] %v74
    %s97 = scalar_lea.vmem [#allocation1], 32
    %98 = vst [vmem:[%s97] ss:$4 sm:$0xff] %v69
    %s99 = scalar_lea.vmem [#allocation1], 33
    %100 = vst [vmem:[%s99] ss:$4 sm:$0xff] %v71
    %s101 = scalar_lea.vmem [#allocation1], 34
    %102 = vst [vmem:[%s101] ss:$4 sm:$0xff] %v73
    %s103 = scalar_lea.vmem [#allocation1], 35
    %104 = vst [vmem:[%s103] ss:$4 sm:$0xff] %v75
    %v105 = vld.sshfl [vmem:[#allocation1] sm:$0xff pattern:$0x73625140]
    %v106 = vld.sshfl [vmem:[#allocation1 + $0x8] sm:$0xff pattern:$0x73625140]
    %v107 = vld.sshfl [vmem:[#allocation1 + $0x10] sm:$0xff pattern:$0x73625140]
    %v108 = vld.sshfl [vmem:[#allocation1 + $0x18] sm:$0xff pattern:$0x73625140]
    %v109 = vld.sshfl [vmem:[#allocation1 + $0x20] sm:$0xff pattern:$0x73625140]
    %v110 = vld.sshfl [vmem:[#allocation1 + $0x28] sm:$0xff pattern:$0x73625140]
    %v111 = vld.sshfl [vmem:[#allocation1 + $0x30] sm:$0xff pattern:$0x73625140]
    %v112 = vld.sshfl [vmem:[#allocation1 + $0x38] sm:$0xff pattern:$0x73625140]
    %v121 = vsel %vm81, %v105, 0.0
    %v122 = vsel %vm81, %v106, 0.0
    %v123 = vsel %vm81, %v107, 0.0
    %v124 = vsel %vm81, %v108, 0.0
    %v125 = vsel %vm81, %v109, 0.0
    %v126 = vsel %vm81, %v110, 0.0
    %v127 = vsel %vm81, %v111, 0.0
    %v128 = vsel %vm81, %v112, 0.0
    %v129 = vadd.f32 %v121, 0.0
    %v130 = vadd.f32 %v122, 0.0
    %v131 = vadd.f32 %v123, 0.0
    %v132 = vadd.f32 %v124, 0.0
    %v133 = vadd.f32 %v125, 0.0
    %v134 = vadd.f32 %v126, 0.0
    %v135 = vadd.f32 %v127, 0.0
    %v136 = vadd.f32 %v128, 0.0
    %137 = vst [vmem:[#allocation7] sm:$0xff] %v129
    %138 = vst [vmem:[#allocation7 + $0x8] sm:$0xff] %v130
    %139 = vst [vmem:[#allocation7 + $0x10] sm:$0xff] %v131
    %140 = vst [vmem:[#allocation7 + $0x18] sm:$0xff] %v132
    %141 = vst [vmem:[#allocation7 + $0x20] sm:$0xff] %v133
    %142 = vst [vmem:[#allocation7 + $0x28] sm:$0xff] %v134
    %143 = vst [vmem:[#allocation7 + $0x30] sm:$0xff] %v135
    %144 = vst [vmem:[#allocation7 + $0x38] sm:$0xff] %v136
    // Predicated region
    $region18: #{tpu_custom_call.1} parent=1 // pred_check
      _
    $region19: #{tpu_custom_call.1} parent=1 // pred_check_branch
      %146 = sbr.rel (0) target = $region21
    $region20: #{tpu_custom_call.1} parent=1 // pred_region
      %148 = vsyncadd [#allocation4], 0
      %s150 = sshll.u32 [#allocation7], 4
      %s151 = int_to_ptr.vmem [resolvable:$true] %s150
      %s152 = sshll.u32 %s2, 4
      %s153 = int_to_ptr.hbm [resolvable:$true] %s152
      %155 = dma.vmem_to_hbm [thread:$0]  %s151, 1024, %s153, [#allocation4]
    $region21: #{tpu_custom_call.1} parent=1 // pred_fallthru
      _
    // Predicated region
    $region22: #{tpu_custom_call.1} parent=1 // pred_check
      _
    $region23: #{tpu_custom_call.1} parent=1 // pred_check_branch
      %157 = sbr.rel (0) target = $region25
    $region24: #{tpu_custom_call.1} parent=1 // pred_region
      %159 = dma.done [#allocation4], 1024
    $region25: #{tpu_custom_call.1} parent=1 // pred_fallthru
      _
    %160 = vsyncpa [#allocation3], 1
    %161 = vsyncpa [#allocation6], 1
    %162 = vsyncpa [#allocation4], 1

</llo_original>
